<compile_context>
chip_gen: v5e
topology: v5e:2x2
jax: 0.10.0
libtpu: 0.0.40
codegen_flags: <defaults>
</compile_context>

<pallas_src>
import functools

import jax
import jax.numpy as jnp
from jax.experimental import pallas as pl
from jax.experimental.pallas import tpu as pltpu


_ACT_FNS = {
    "tanh": jnp.tanh,
    "relu": lambda v: jnp.maximum(v, 0.0),
    "sigmoid": jax.nn.sigmoid,
    "elu": jax.nn.elu,
}


def _round_up(v, m):
    return (v + m - 1) // m * m


# ------------------------------------------------------------------ kernel
def _fused_mlp_kernel(*refs, n_layers, act_name, act_mask):
    """refs = (x, w0, b0, w1, b1, ..., w_{L-1}, b_{L-1}, out).

    All operands are lane-padded to multiples of 128; weights are (K_pad,
    N_pad), biases (1, N_pad).  Intermediates stay in registers/VMEM.
    """
    x_ref = refs[0]
    o_ref = refs[-1]
    act = _ACT_FNS[act_name]
    h = x_ref[...]
    for li in range(n_layers):
        w = refs[1 + 2 * li][...]
        b = refs[2 + 2 * li][...]
        h = jnp.dot(h, w, preferred_element_type=jnp.float32) + b
        if act_mask[li]:
            h = act(h)
    o_ref[...] = h.astype(o_ref.dtype)


# ------------------------------------------------------------------ wrapper
def _fused_mlp_pallas(x_pad, layers, act_name, act_mask, tm):
    """x_pad: (M_pad, K0_pad).  layers: [(w_pad (Kp,Np), b_pad (1,Np)), ...]."""
    m_pad, k0 = x_pad.shape
    n_layers = len(layers)
    n_out = layers[-1][0].shape[1]          # already lane-padded (multiple of 128)

    in_specs = [pl.BlockSpec((tm, k0), lambda i: (i, 0))]
    operands = [x_pad]
    for w, b in layers:
        # Whole (tiny) parameter arrays as a single block with a constant
        # index_map -> they stay resident in VMEM across all grid steps.
        in_specs.append(pl.BlockSpec(w.shape, lambda i: (0, 0)))
        in_specs.append(pl.BlockSpec(b.shape, lambda i: (0, 0)))
        operands.extend([w, b])

    kernel = functools.partial(
        _fused_mlp_kernel, n_layers=n_layers, act_name=act_name,
        act_mask=act_mask)

    return pl.pallas_call(
        kernel,
        out_shape=jax.ShapeDtypeStruct((m_pad, n_out), jnp.float32),
        grid=(m_pad // tm,),
        in_specs=in_specs,
        out_specs=pl.BlockSpec((tm, n_out), lambda i: (i, 0)),
        compiler_params=pltpu.CompilerParams(
            dimension_semantics=("parallel",)),
    )(*operands)


@functools.partial(jax.jit, static_argnames=("activation", "transfer_off"))
def simple_mlp_forward(params, x, activation="tanh", transfer_off=False):
    """SimpleMLP.forward.

    params: tuple of (w, b) per Linear in forward order, PyTorch layout
            (w: (out_features, in_features), b: (out_features,)).
    x: (N, input_size) float32.

    Semantics: if len(params) == 1 it is the pure linear model; otherwise the
    transfer function is applied after fc_in (unless transfer_off) and after
    every hidden layer, never after fc_out.
    """
    n = len(params)
    if n == 1:
        act_mask = (False,)
    else:
        act_mask = tuple([not transfer_off] + [True] * (n - 2) + [False])

    m, k0 = x.shape
    dims = [k0] + [w.shape[0] for w, _ in params]
    dims_pad = [_round_up(d, 128) for d in dims]

    # Row tile: small batches collapse to one tile; large batches use 512-row
    # tiles (double-buffered activation DMA, grid shardable across TCs, per-
    # step overhead amortised).
    if m <= 512:
        tm = _round_up(m, 8)
        m_pad = tm
    else:
        tm = 512
        m_pad = _round_up(m, tm)

    x_pad = jnp.pad(x.astype(jnp.float32),
                    ((0, m_pad - m), (0, dims_pad[0] - k0)))

    layers = []
    for i, (w, b) in enumerate(params):
        wt = w.astype(jnp.float32).T                       # (in, out)
        wp = jnp.pad(wt, ((0, dims_pad[i] - wt.shape[0]),
                          (0, dims_pad[i + 1] - wt.shape[1])))
        bp = jnp.pad(b.astype(jnp.float32),
                     (0, dims_pad[i + 1] - b.shape[0])).reshape(1, -1)
        layers.append((wp, bp))

    out_pad = _fused_mlp_pallas(x_pad, layers, activation, act_mask, tm)
    return out_pad[:m, :dims[-1]]


# ------------------------------------------------------------------ model init
def init_simple_mlp_params(key, input_size, h_size=10, n_layers=3):
    """Matches nn.Linear default init: U(-1/sqrt(fan_in), 1/sqrt(fan_in))."""
    def linear(k, fan_in, fan_out):
        kw, kb = jax.random.split(k)
        bound = 1.0 / jnp.sqrt(jnp.float32(fan_in))
        w = jax.random.uniform(kw, (fan_out, fan_in), jnp.float32, -bound, bound)
        b = jax.random.uniform(kb, (fan_out,), jnp.float32, -bound, bound)
        return (w, b)

    if n_layers == 1:
        return (linear(key, input_size, 1),)
    ks = jax.random.split(key, n_layers)
    layers = [linear(ks[0], input_size, h_size)]
    for i in range(n_layers - 2):
        layers.append(linear(ks[1 + i], h_size, h_size))
    layers.append(linear(ks[-1], h_size, 1))
    return tuple(layers)


# ------------------------------------------------------------------ reference
def simple_mlp_reference(params, x, activation="tanh", transfer_off=False):
    act = _ACT_FNS[activation]
    n = len(params)
    h = x
    for i, (w, b) in enumerate(params):
        h = jnp.dot(h, w.T, precision=jax.lax.Precision.HIGHEST) + b
        last = (i == n - 1)
        if (not last) and (n > 1) and not (i == 0 and transfer_off):
            h = act(h)
    return h


# ------------------------------------------------------------------ main
if __name__ == "__main__":
    key = jax.random.PRNGKey(0)
    k_params, k_x = jax.random.split(key)

    # --- main config: 3-layer MLP, tanh, small batch (single row tile) -----
    batch, input_size, h_size, n_layers = 64, 32, 10, 3
    params = init_simple_mlp_params(k_params, input_size, h_size, n_layers)
    x = jax.random.normal(k_x, (batch, input_size), jnp.float32)

    out = jax.block_until_ready(simple_mlp_forward(params, x, activation="tanh"))
    assert out.shape == (batch, 1), out.shape
    assert bool(jnp.all(jnp.isfinite(out)))
    ref = simple_mlp_reference(params, x, activation="tanh")
    assert bool(jnp.allclose(out, ref, atol=1e-3, rtol=1e-3)), \
        float(jnp.max(jnp.abs(out - ref)))

    # --- linear-model path (n_layers == 1) ---------------------------------
    params1 = init_simple_mlp_params(k_params, input_size, h_size, 1)
    out1 = jax.block_until_ready(simple_mlp_forward(params1, x))
    ref1 = simple_mlp_reference(params1, x)
    assert out1.shape == (batch, 1)
    assert bool(jnp.allclose(out1, ref1, atol=1e-3, rtol=1e-3))

    # --- transfer_off path (no activation after fc_in) ----------------------
    out_to = jax.block_until_ready(
        simple_mlp_forward(params, x, activation="tanh", transfer_off=True))
    ref_to = simple_mlp_reference(params, x, activation="tanh", transfer_off=True)
    assert bool(jnp.allclose(out_to, ref_to, atol=1e-3, rtol=1e-3))

    print("KERNEL_OK")
</pallas_src>

<mosaic_0001>
module attributes {stable_mosaic.version = 11 : i64} {
  func.func @_fused_mlp_kernel(%arg0: i32, %arg1: memref<64x128xf32, #tpu.memory_space<vmem>>, %arg2: memref<128x128xf32, #tpu.memory_space<vmem>>, %arg3: memref<1x128xf32, #tpu.memory_space<vmem>>, %arg4: memref<128x128xf32, #tpu.memory_space<vmem>>, %arg5: memref<1x128xf32, #tpu.memory_space<vmem>>, %arg6: memref<128x128xf32, #tpu.memory_space<vmem>>, %arg7: memref<1x128xf32, #tpu.memory_space<vmem>>, %arg8: memref<64x128xf32, #tpu.memory_space<vmem>>) attributes {dimension_semantics = [#tpu.dimension_semantics<parallel>], iteration_bounds = array<i64: 1>, scalar_prefetch = 0 : i64, scratch_operands = 0 : i64, tpu.core_type = #tpu.core_type<tc>, window_params = [{transform_indices = @transform_0, window_bounds = array<i64: 64, 128>}, {pipeline_mode = #tpu.pipeline_mode<synchronous>, transform_indices = @transform_1, window_bounds = array<i64: 128, 128>}, {pipeline_mode = #tpu.pipeline_mode<synchronous>, transform_indices = @transform_2, window_bounds = array<i64: 1, 128>}, {pipeline_mode = #tpu.pipeline_mode<synchronous>, transform_indices = @transform_3, window_bounds = array<i64: 128, 128>}, {pipeline_mode = #tpu.pipeline_mode<synchronous>, transform_indices = @transform_4, window_bounds = array<i64: 1, 128>}, {pipeline_mode = #tpu.pipeline_mode<synchronous>, transform_indices = @transform_5, window_bounds = array<i64: 128, 128>}, {pipeline_mode = #tpu.pipeline_mode<synchronous>, transform_indices = @transform_6, window_bounds = array<i64: 1, 128>}, {transform_indices = @transform_7, window_bounds = array<i64: 64, 128>}]} {
    %c0 = arith.constant 0 : index
    %c0_0 = arith.constant 0 : index
    %0 = vector.load %arg1[%c0, %c0_0] : memref<64x128xf32, #tpu.memory_space<vmem>>, vector<64x128xf32>
    %c0_1 = arith.constant 0 : index
    %c0_2 = arith.constant 0 : index
    %1 = vector.load %arg2[%c0_1, %c0_2] : memref<128x128xf32, #tpu.memory_space<vmem>>, vector<128x128xf32>
    %c0_3 = arith.constant 0 : index
    %c0_4 = arith.constant 0 : index
    %2 = vector.load %arg3[%c0_3, %c0_4] : memref<1x128xf32, #tpu.memory_space<vmem>>, vector<1x128xf32>
    %cst = arith.constant dense<0.000000e+00> : vector<64x128xf32>
    %3 = tpu.matmul %0, %1, %cst {dimension_numbers = #tpu.dot_dimension_numbers<[1], [0], [0], [1], [0, 0, 1, 1], [], []>} : vector<64x128xf32>, vector<128x128xf32>, vector<64x128xf32> -> vector<64x128xf32>
    %4 = vector.broadcast %2 : vector<1x128xf32> to vector<64x128xf32>
    %5 = arith.addf %3, %4 : vector<64x128xf32>
    %6 = math.tanh %5 : vector<64x128xf32>
    %c0_5 = arith.constant 0 : index
    %c0_6 = arith.constant 0 : index
    %7 = vector.load %arg4[%c0_5, %c0_6] : memref<128x128xf32, #tpu.memory_space<vmem>>, vector<128x128xf32>
    %c0_7 = arith.constant 0 : index
    %c0_8 = arith.constant 0 : index
    %8 = vector.load %arg5[%c0_7, %c0_8] : memref<1x128xf32, #tpu.memory_space<vmem>>, vector<1x128xf32>
    %cst_9 = arith.constant dense<0.000000e+00> : vector<64x128xf32>
    %9 = tpu.matmul %6, %7, %cst_9 {dimension_numbers = #tpu.dot_dimension_numbers<[1], [0], [0], [1], [0, 0, 1, 1], [], []>} : vector<64x128xf32>, vector<128x128xf32>, vector<64x128xf32> -> vector<64x128xf32>
    %10 = vector.broadcast %8 : vector<1x128xf32> to vector<64x128xf32>
    %11 = arith.addf %9, %10 : vector<64x128xf32>
    %12 = math.tanh %11 : vector<64x128xf32>
    %c0_10 = arith.constant 0 : index
    %c0_11 = arith.constant 0 : index
    %13 = vector.load %arg6[%c0_10, %c0_11] : memref<128x128xf32, #tpu.memory_space<vmem>>, vector<128x128xf32>
    %c0_12 = arith.constant 0 : index
    %c0_13 = arith.constant 0 : index
    %14 = vector.load %arg7[%c0_12, %c0_13] : memref<1x128xf32, #tpu.memory_space<vmem>>, vector<1x128xf32>
    %cst_14 = arith.constant dense<0.000000e+00> : vector<64x128xf32>
    %15 = tpu.matmul %12, %13, %cst_14 {dimension_numbers = #tpu.dot_dimension_numbers<[1], [0], [0], [1], [0, 0, 1, 1], [], []>} : vector<64x128xf32>, vector<128x128xf32>, vector<64x128xf32> -> vector<64x128xf32>
    %16 = vector.broadcast %14 : vector<1x128xf32> to vector<64x128xf32>
    %17 = arith.addf %15, %16 : vector<64x128xf32>
    %c0_15 = arith.constant 0 : index
    %c0_16 = arith.constant 0 : index
    %18 = vector.load %arg8[%c0_15, %c0_16] : memref<64x128xf32, #tpu.memory_space<vmem>>, vector<64x128xf32>
    tpu.vector_store %arg8[%c0_15, %c0_16], %17 {strides = array<i32>} : memref<64x128xf32, #tpu.memory_space<vmem>>, vector<64x128xf32>,
    return
  }
  func.func @transform_0(%arg0: i32) -> (i32, i32) {
    %c0_i32 = arith.constant 0 : i32
    %c0_i32_0 = arith.constant 0 : i32
    return %arg0, %c0_i32 : i32, i32
  }
  func.func @transform_1(%arg0: i32) -> (i32, i32) {
    %c0_i32 = arith.constant 0 : i32
    %c0_i32_0 = arith.constant 0 : i32
    %c0_i32_1 = arith.constant 0 : i32
    return %c0_i32, %c0_i32_0 : i32, i32
  }
  func.func @transform_2(%arg0: i32) -> (i32, i32) {
    %c0_i32 = arith.constant 0 : i32
    %c0_i32_0 = arith.constant 0 : i32
    %c0_i32_1 = arith.constant 0 : i32
    return %c0_i32, %c0_i32_0 : i32, i32
  }
  func.func @transform_3(%arg0: i32) -> (i32, i32) {
    %c0_i32 = arith.constant 0 : i32
    %c0_i32_0 = arith.constant 0 : i32
    %c0_i32_1 = arith.constant 0 : i32
    return %c0_i32, %c0_i32_0 : i32, i32
  }
  func.func @transform_4(%arg0: i32) -> (i32, i32) {
    %c0_i32 = arith.constant 0 : i32
    %c0_i32_0 = arith.constant 0 : i32
    %c0_i32_1 = arith.constant 0 : i32
    return %c0_i32, %c0_i32_0 : i32, i32
  }
  func.func @transform_5(%arg0: i32) -> (i32, i32) {
    %c0_i32 = arith.constant 0 : i32
    %c0_i32_0 = arith.constant 0 : i32
    %c0_i32_1 = arith.constant 0 : i32
    return %c0_i32, %c0_i32_0 : i32, i32
  }
  func.func @transform_6(%arg0: i32) -> (i32, i32) {
    %c0_i32 = arith.constant 0 : i32
    %c0_i32_0 = arith.constant 0 : i32
    %c0_i32_1 = arith.constant 0 : i32
    return %c0_i32, %c0_i32_0 : i32, i32
  }
  func.func @transform_7(%arg0: i32) -> (i32, i32) {
    %c0_i32 = arith.constant 0 : i32
    %c0_i32_0 = arith.constant 0 : i32
    return %arg0, %c0_i32 : i32, i32
  }
}

</mosaic_0001>

<llo_original>
// kernel: simple_mlp_forward.1
$region0: #{simple_mlp_forward.1}
  #allocation0 [shape = 'u32[]', space=smem, size = 0x4, offset = 0x4, fixed_abs, tag = 'smem constant byte address 0x4 - core index']
  #allocation1 [shape = 'u32[72,128]{1,0:T(1,128)}', space=vmem, size = 0x9000, scoped, tag = 'internal scratch']
  %s0 = inlined_call_operand.vmem [shape: f32[64,128], index: 0, kind: input, shape index: {}]
  %s1 = inlined_call_operand.vmem [shape: f32[128,128], index: 1, kind: input, shape index: {}]
  %s2 = inlined_call_operand.vmem [shape: f32[1,128], index: 2, kind: input, shape index: {}]
  %s3 = inlined_call_operand.vmem [shape: f32[128,128], index: 3, kind: input, shape index: {}]
  %s4 = inlined_call_operand.vmem [shape: f32[1,128], index: 4, kind: input, shape index: {}]
  %s5 = inlined_call_operand.vmem [shape: f32[128,128], index: 5, kind: input, shape index: {}]
  %s6 = inlined_call_operand.vmem [shape: f32[1,128], index: 6, kind: input, shape index: {}]
  %s7 = inlined_call_operand.vmem [shape: f32[64,128], index: 7, kind: output, shape index: {}]
  %s8 = sld [smem:[#allocation0]]
  $region38: #{simple_mlp_forward.1} parent=0
    _
  %s10 = ssub.s32 1, %s8
  %s11 = scalar_select 0, %s10, %s8
  // Predicated region
  $region2: #{simple_mlp_forward.1} parent=0 // pred_check
    _
  $region3: #{simple_mlp_forward.1} parent=0 // pred_check_branch
    %13 = sbr.rel (0) target = $region5
  $region4: #{simple_mlp_forward.1} parent=0 // pred_region
    _
  $region5: #{simple_mlp_forward.1} parent=0 // pred_fallthru
    _
  // Predicated region
  $region6: #{simple_mlp_forward.1} parent=0 // pred_check
    _
  $region7: #{simple_mlp_forward.1} parent=0 // pred_check_branch
    %15 = sbr.rel (0) target = $region9
  $region8: #{simple_mlp_forward.1} parent=0 // pred_region
    _
  $region9: #{simple_mlp_forward.1} parent=0 // pred_fallthru
    _
  // Predicated region
  $region10: #{simple_mlp_forward.1} parent=0 // pred_check
    _
  $region11: #{simple_mlp_forward.1} parent=0 // pred_check_branch
    %17 = sbr.rel (0) target = $region13
  $region12: #{simple_mlp_forward.1} parent=0 // pred_region
    _
  $region13: #{simple_mlp_forward.1} parent=0 // pred_fallthru
    _
  // Predicated region
  $region14: #{simple_mlp_forward.1} parent=0 // pred_check
    _
  $region15: #{simple_mlp_forward.1} parent=0 // pred_check_branch
    %19 = sbr.rel (0) target = $region17
  $region16: #{simple_mlp_forward.1} parent=0 // pred_region
    _
  $region17: #{simple_mlp_forward.1} parent=0 // pred_fallthru
    _
  // Predicated region
  $region18: #{simple_mlp_forward.1} parent=0 // pred_check
    _
  $region19: #{simple_mlp_forward.1} parent=0 // pred_check_branch
    %21 = sbr.rel (0) target = $region21
  $region20: #{simple_mlp_forward.1} parent=0 // pred_region
    _
  $region21: #{simple_mlp_forward.1} parent=0 // pred_fallthru
    _
  // Predicated region
  $region22: #{simple_mlp_forward.1} parent=0 // pred_check
    _
  $region23: #{simple_mlp_forward.1} parent=0 // pred_check_branch
    %23 = sbr.rel (0) target = $region25
  $region24: #{simple_mlp_forward.1} parent=0 // pred_region
    _
  $region25: #{simple_mlp_forward.1} parent=0 // pred_fallthru
    _
  // Predicated region
  $region26: #{simple_mlp_forward.1} parent=0 // pred_check
    _
  $region27: #{simple_mlp_forward.1} parent=0 // pred_check_branch
    %25 = sbr.rel (0) target = $region29
  $region28: #{simple_mlp_forward.1} parent=0 // pred_region
    _
  $region29: #{simple_mlp_forward.1} parent=0 // pred_fallthru
    _
  %v26 = vld [vmem:[%s0] sm:$0xff]
  %v27 = vld [vmem:[%s0 + $0x8] sm:$0xff]
  %v28 = vld [vmem:[%s0 + $0x10] sm:$0xff]
  %v29 = vld [vmem:[%s0 + $0x18] sm:$0xff]
  %v30 = vld [vmem:[%s0 + $0x20] sm:$0xff]
  %v31 = vld [vmem:[%s0 + $0x28] sm:$0xff]
  %v32 = vld [vmem:[%s0 + $0x30] sm:$0xff]
  %v33 = vld [vmem:[%s0 + $0x38] sm:$0xff]
  %v34 = vld [vmem:[%s1] sm:$0xff]
  %v35 = vld [vmem:[%s1 + $0x8] sm:$0xff]
  %v36 = vld [vmem:[%s1 + $0x10] sm:$0xff]
  %v37 = vld [vmem:[%s1 + $0x18] sm:$0xff]
  %v38 = vld [vmem:[%s1 + $0x20] sm:$0xff]
  %v39 = vld [vmem:[%s1 + $0x28] sm:$0xff]
  %v40 = vld [vmem:[%s1 + $0x30] sm:$0xff]
  %v41 = vld [vmem:[%s1 + $0x38] sm:$0xff]
  %v42 = vld [vmem:[%s1 + $0x40] sm:$0xff]
  %v43 = vld [vmem:[%s1 + $0x48] sm:$0xff]
  %v44 = vld [vmem:[%s1 + $0x50] sm:$0xff]
  %v45 = vld [vmem:[%s1 + $0x58] sm:$0xff]
  %v46 = vld [vmem:[%s1 + $0x60] sm:$0xff]
  %v47 = vld [vmem:[%s1 + $0x68] sm:$0xff]
  %v48 = vld [vmem:[%s1 + $0x70] sm:$0xff]
  %v49 = vld [vmem:[%s1 + $0x78] sm:$0xff]
  %v50 = vld [vmem:[%s2] sm:$0x1]
  %v52 = vperm.slane %v50, 0
  %54 = vmatpush.msra.mxu0 %v49
  %55 = vmatpush.msra.mxu0 %v48
  %56 = vmatpush.msra.mxu0 %v47
  %57 = vmatpush.msra.mxu0 %v46
  %58 = vmatpush.msra.mxu0 %v45
  %59 = vmatpush.msra.mxu0 %v44
  %60 = vmatpush.msra.mxu0 %v43
  %61 = vmatpush.msra.mxu0 %v42
  %62 = vmatpush.msra.mxu0 %v41
  %63 = vmatpush.msra.mxu0 %v40
  %64 = vmatpush.msra.mxu0 %v39
  %65 = vmatpush.msra.mxu0 %v38
  %66 = vmatpush.msra.mxu0 %v37
  %67 = vmatpush.msra.mxu0 %v36
  %68 = vmatpush.msra.mxu0 %v35
  %69 = vmatpush.msra.mxu0 %v34
  %70 = vmatmul.f32.gmra.mxu0 %v26
  %v71 = vpop.f32.mrf.mxu0
  %v72 = vadd.f32 %v52, %v71
  %73 = vmatmul.f32.gmra.mxu0 %v27
  %v74 = vpop.f32.mrf.mxu0
  %v75 = vadd.f32 %v52, %v74
  %76 = vmatmul.f32.gmra.mxu0 %v28
  %v77 = vpop.f32.mrf.mxu0
  %v78 = vadd.f32 %v52, %v77
  %79 = vmatmul.f32.gmra.mxu0 %v29
  %v80 = vpop.f32.mrf.mxu0
  %v81 = vadd.f32 %v52, %v80
  %82 = vmatmul.f32.gmra.mxu0 %v30
  %v83 = vpop.f32.mrf.mxu0
  %v84 = vadd.f32 %v52, %v83
  %85 = vmatmul.f32.gmra.mxu0 %v31
  %v86 = vpop.f32.mrf.mxu0
  %v87 = vadd.f32 %v52, %v86
  %88 = vmatmul.f32.gmra.mxu0 %v32
  %v89 = vpop.f32.mrf.mxu0
  %v90 = vadd.f32 %v52, %v89
  %91 = vmatmul.f32.gmra.mxu0 %v33
  %v92 = vpop.f32.mrf.mxu0
  %v93 = vadd.f32 %v52, %v92
  %94 = vdwg.mxu0
  %v95 = vtanh.pop %v72
  %v96 = vtanh.pop %v75
  %v97 = vtanh.pop %v78
  %v98 = vtanh.pop %v81
  %v99 = vtanh.pop %v84
  %v100 = vtanh.pop %v87
  %v101 = vtanh.pop %v90
  %v102 = vtanh.pop %v93
  %v103 = vld [vmem:[%s3] sm:$0xff]
  %v104 = vld [vmem:[%s3 + $0x8] sm:$0xff]
  %v105 = vld [vmem:[%s3 + $0x10] sm:$0xff]
  %v106 = vld [vmem:[%s3 + $0x18] sm:$0xff]
  %v107 = vld [vmem:[%s3 + $0x20] sm:$0xff]
  %v108 = vld [vmem:[%s3 + $0x28] sm:$0xff]
  %v109 = vld [vmem:[%s3 + $0x30] sm:$0xff]
  %v110 = vld [vmem:[%s3 + $0x38] sm:$0xff]
  %v111 = vld [vmem:[%s3 + $0x40] sm:$0xff]
  %v112 = vld [vmem:[%s3 + $0x48] sm:$0xff]
  %v113 = vld [vmem:[%s3 + $0x50] sm:$0xff]
  %v114 = vld [vmem:[%s3 + $0x58] sm:$0xff]
  %v115 = vld [vmem:[%s3 + $0x60] sm:$0xff]
  %v116 = vld [vmem:[%s3 + $0x68] sm:$0xff]
  %v117 = vld [vmem:[%s3 + $0x70] sm:$0xff]
  %v118 = vld [vmem:[%s3 + $0x78] sm:$0xff]
  %v119 = vld [vmem:[%s4] sm:$0x1]
  %v121 = vperm.slane %v119, 0
  %123 = vmatpush.msra.mxu0 %v118
  %124 = vmatpush.msra.mxu0 %v117
  %125 = vmatpush.msra.mxu0 %v116
  %126 = vmatpush.msra.mxu0 %v115
  %127 = vmatpush.msra.mxu0 %v114
  %128 = vmatpush.msra.mxu0 %v113
  %129 = vmatpush.msra.mxu0 %v112
  %130 = vmatpush.msra.mxu0 %v111
  %131 = vmatpush.msra.mxu0 %v110
  %132 = vmatpush.msra.mxu0 %v109
  %133 = vmatpush.msra.mxu0 %v108
  %134 = vmatpush.msra.mxu0 %v107
  %135 = vmatpush.msra.mxu0 %v106
  %136 = vmatpush.msra.mxu0 %v105
  %137 = vmatpush.msra.mxu0 %v104
  %138 = vmatpush.msra.mxu0 %v103
  %139 = vmatmul.f32.gmra.mxu0 %v95
  %v140 = vpop.f32.mrf.mxu0
  %v141 = vadd.f32 %v121, %v140
  %142 = vmatmul.f32.gmra.mxu0 %v96
  %v143 = vpop.f32.mrf.mxu0
  %v144 = vadd.f32 %v121, %v143
  %145 = vmatmul.f32.gmra.mxu0 %v97
  %v146 = vpop.f32.mrf.mxu0
  %v147 = vadd.f32 %v121, %v146
  %148 = vmatmul.f32.gmra.mxu0 %v98
  %v149 = vpop.f32.mrf.mxu0
  %v150 = vadd.f32 %v121, %v149
  %151 = vmatmul.f32.gmra.mxu0 %v99
  %v152 = vpop.f32.mrf.mxu0
  %v153 = vadd.f32 %v121, %v152
  %154 = vmatmul.f32.gmra.mxu0 %v100
  %v155 = vpop.f32.mrf.mxu0
  %v156 = vadd.f32 %v121, %v155
  %157 = vmatmul.f32.gmra.mxu0 %v101
  %v158 = vpop.f32.mrf.mxu0
  %v159 = vadd.f32 %v121, %v158
  %160 = vmatmul.f32.gmra.mxu0 %v102
  %v161 = vpop.f32.mrf.mxu0
  %v162 = vadd.f32 %v121, %v161
  %163 = vdwg.mxu0
  %v164 = vtanh.pop %v141
  %v165 = vtanh.pop %v144
  %v166 = vtanh.pop %v147
  %v167 = vtanh.pop %v150
  %v168 = vtanh.pop %v153
  %v169 = vtanh.pop %v156
  %v170 = vtanh.pop %v159
  %v171 = vtanh.pop %v162
  %v172 = vld [vmem:[%s5] sm:$0xff]
  %v173 = vld [vmem:[%s5 + $0x8] sm:$0xff]
  %v174 = vld [vmem:[%s5 + $0x10] sm:$0xff]
  %v175 = vld [vmem:[%s5 + $0x18] sm:$0xff]
  %v176 = vld [vmem:[%s5 + $0x20] sm:$0xff]
  %v177 = vld [vmem:[%s5 + $0x28] sm:$0xff]
  %v178 = vld [vmem:[%s5 + $0x30] sm:$0xff]
  %v179 = vld [vmem:[%s5 + $0x38] sm:$0xff]
  %v180 = vld [vmem:[%s5 + $0x40] sm:$0xff]
  %v181 = vld [vmem:[%s5 + $0x48] sm:$0xff]
  %v182 = vld [vmem:[%s5 + $0x50] sm:$0xff]
  %v183 = vld [vmem:[%s5 + $0x58] sm:$0xff]
  %v184 = vld [vmem:[%s5 + $0x60] sm:$0xff]
  %v185 = vld [vmem:[%s5 + $0x68] sm:$0xff]
  %v186 = vld [vmem:[%s5 + $0x70] sm:$0xff]
  %v187 = vld [vmem:[%s5 + $0x78] sm:$0xff]
  %v188 = vld [vmem:[%s6] sm:$0x1]
  %v190 = vperm.slane %v188, 0
  %192 = vmatpush.msra.mxu0 %v187
  %193 = vmatpush.msra.mxu0 %v186
  %194 = vmatpush.msra.mxu0 %v185
  %195 = vmatpush.msra.mxu0 %v184
  %196 = vmatpush.msra.mxu0 %v183
  %197 = vmatpush.msra.mxu0 %v182
  %198 = vmatpush.msra.mxu0 %v181
  %199 = vmatpush.msra.mxu0 %v180
  %200 = vmatpush.msra.mxu0 %v179
  %201 = vmatpush.msra.mxu0 %v178
  %202 = vmatpush.msra.mxu0 %v177
  %203 = vmatpush.msra.mxu0 %v176
  %204 = vmatpush.msra.mxu0 %v175
  %205 = vmatpush.msra.mxu0 %v174
  %206 = vmatpush.msra.mxu0 %v173
  %207 = vmatpush.msra.mxu0 %v172
  %208 = vmatmul.f32.gmra.mxu0 %v164
  %v209 = vpop.f32.mrf.mxu0
  %v210 = vadd.f32 %v190, %v209
  %211 = vmatmul.f32.gmra.mxu0 %v165
  %v212 = vpop.f32.mrf.mxu0
  %v213 = vadd.f32 %v190, %v212
  %214 = vmatmul.f32.gmra.mxu0 %v166
  %v215 = vpop.f32.mrf.mxu0
  %v216 = vadd.f32 %v190, %v215
  %217 = vmatmul.f32.gmra.mxu0 %v167
  %v218 = vpop.f32.mrf.mxu0
  %v219 = vadd.f32 %v190, %v218
  %220 = vmatmul.f32.gmra.mxu0 %v168
  %v221 = vpop.f32.mrf.mxu0
  %v222 = vadd.f32 %v190, %v221
  %223 = vmatmul.f32.gmra.mxu0 %v169
  %v224 = vpop.f32.mrf.mxu0
  %v225 = vadd.f32 %v190, %v224
  %226 = vmatmul.f32.gmra.mxu0 %v170
  %v227 = vpop.f32.mrf.mxu0
  %v228 = vadd.f32 %v190, %v227
  %229 = vmatmul.f32.gmra.mxu0 %v171
  %v230 = vpop.f32.mrf.mxu0
  %v231 = vadd.f32 %v190, %v230
  %232 = vdwg.mxu0
  %233 = vst [vmem:[%s7] sm:$0xff] %v210
  %234 = vst [vmem:[%s7 + $0x8] sm:$0xff] %v213
  %235 = vst [vmem:[%s7 + $0x10] sm:$0xff] %v216
  %236 = vst [vmem:[%s7 + $0x18] sm:$0xff] %v219
  %237 = vst [vmem:[%s7 + $0x20] sm:$0xff] %v222
  %238 = vst [vmem:[%s7 + $0x28] sm:$0xff] %v225
  %239 = vst [vmem:[%s7 + $0x30] sm:$0xff] %v228
  %240 = vst [vmem:[%s7 + $0x38] sm:$0xff] %v231
  // Predicated region
  $region30: #{simple_mlp_forward.1} parent=0 // pred_check
    _
  $region31: #{simple_mlp_forward.1} parent=0 // pred_check_branch
    %242 = sbr.rel (0) target = $region33
  $region32: #{simple_mlp_forward.1} parent=0 // pred_region
    _
  $region33: #{simple_mlp_forward.1} parent=0 // pred_fallthru
    _
  // Predicated region
  $region34: #{simple_mlp_forward.1} parent=0 // pred_check
    _
  $region35: #{simple_mlp_forward.1} parent=0 // pred_check_branch
    %244 = sbr.rel (0) target = $region37
  $region36: #{simple_mlp_forward.1} parent=0 // pred_region
    _
  $region37: #{simple_mlp_forward.1} parent=0 // pred_fallthru
    _

</llo_original>
